<compile_context>
chip_gen: v5e
topology: v5e:2x2
jax: 0.10.0
libtpu: 0.0.40
codegen_flags: <defaults>
</compile_context>

<pallas_src>
import jax
import jax.numpy as jnp
import numpy as np
from jax.experimental import pallas as pl
from jax.experimental.pallas import tpu as pltpu


# ----------------------------------------------------------------------------
# Kernel
# ----------------------------------------------------------------------------
def ae_kernel(x_ref, w1_ref, b1_ref, w23_ref, b23_ref, w4_ref, b4_ref, out_ref):
    # x arrives in f32; cast to bf16 in-kernel (cheap VPU pack, hidden under
    # the matmul) so the wrapper never materializes a bf16 copy of x in HBM.
    x = x_ref[...].astype(jnp.bfloat16)

    # ---- encoder layer 1 + ReLU (bf16 MXU operands, f32 accumulation) ----
    h1 = jnp.dot(x, w1_ref[...], preferred_element_type=jnp.float32) + b1_ref[...]
    h1 = jnp.maximum(h1, 0.0)

    # ---- fused encoder layer 2 + decoder layer 1 (+ ReLU) ----
    # No nonlinearity sits between them in the reference, so w2@w3 was folded
    # into a single (H, H) weight at parameter-prep time.
    h2 = jnp.dot(h1.astype(jnp.bfloat16), w23_ref[...],
                 preferred_element_type=jnp.float32) + b23_ref[...]
    h2 = jnp.maximum(h2, 0.0)

    # ---- decoder layer 2 + Sigmoid (EUP exp + EUP approx reciprocal) ----
    y = jnp.dot(h2.astype(jnp.bfloat16), w4_ref[...],
                preferred_element_type=jnp.float32) + b4_ref[...]
    y = pl.reciprocal(1.0 + jnp.exp(-y), approx=True)

    out_ref[...] = y.astype(out_ref.dtype)


# ----------------------------------------------------------------------------
# Parameter prep (runs ONCE, not on the per-call hot path)
# ----------------------------------------------------------------------------
def prepare_params(params):
    """Fuse the latent matmuls and cast MXU operands to bf16, once."""
    (w1, b1, w2, b2, w3, b3, w4, b4) = params
    w23 = w2 @ w3                     # (H, H), exact algebraic fusion (f32)
    b23 = b2 @ w3 + b3                # (1, H)
    prepped = (
        w1.astype(jnp.bfloat16), b1,                 # biases stay f32
        w23.astype(jnp.bfloat16), b23,
        w4.astype(jnp.bfloat16), b4,
    )
    # Materialize now so nothing is re-traced/re-computed per forward call.
    return jax.tree_util.tree_map(jax.block_until_ready, prepped)


# ----------------------------------------------------------------------------
# Tiling heuristic
# ----------------------------------------------------------------------------
def _num_tensorcores():
    """Best-effort detection: v7x has 2 TensorCores/chip, v5e/v6e have 1."""
    try:
        kind = jax.devices()[0].device_kind.lower()
        if "v7" in kind:
            return 2
    except Exception:
        pass
    return 1


def _pick_tile_b(B, num_cores):
    if num_cores >= 2 and B >= 32 and B % 2 == 0:
        # v7x: even "parallel" grid so both TensorCores get a batch tile;
        # cap the per-core tile so very large batches still pipeline.
        t = B // 2
        while t > 1024 and t % 2 == 0:
            t //= 2
        return t
    # Single-TC (v5e/v6e) or tiny batch: the grid is a serial loop, so take
    # one big step; for large batches cap at ~512 rows (near HBM roofline).
    t = B
    while t > 512 and t % 2 == 0:
        t //= 2
    return t


# ----------------------------------------------------------------------------
# Forward
# ----------------------------------------------------------------------------
def autoencoder_forward(x, prepped_params, *, tile_b=None, out_dtype=None):
    """x: (B, D) float32, prepped_params from prepare_params().
    Returns (B, D) reconstruction (f32 by default; pass out_dtype=jnp.bfloat16
    to halve the output HBM stream if the consumer tolerates it)."""
    (w1_bf, b1, w23_bf, b23, w4_bf, b4) = prepped_params
    B, D = x.shape
    out_dtype = x.dtype if out_dtype is None else out_dtype

    if tile_b is None:
        tile_b = _pick_tile_b(B, _num_tensorcores())
    tile_b = min(tile_b, B)
    assert B % tile_b == 0, "pad the batch to a multiple of tile_b"
    grid = (B // tile_b,)

    # Whole weight/bias tensors are single blocks (block_shape == array shape)
    # so they stay resident in VMEM and are reused across every batch tile.
    def full(arr):
        return pl.BlockSpec(arr.shape, lambda i: tuple(0 for _ in arr.shape))

    return pl.pallas_call(
        ae_kernel,
        out_shape=jax.ShapeDtypeStruct((B, D), out_dtype),
        grid_spec=pltpu.PrefetchScalarGridSpec(
            num_scalar_prefetch=0,
            grid=grid,
            in_specs=[
                pl.BlockSpec((tile_b, D), lambda i: (i, 0)),   # x tile (f32)
                full(w1_bf), full(b1),
                full(w23_bf), full(b23),
                full(w4_bf), full(b4),
            ],
            out_specs=pl.BlockSpec((tile_b, D), lambda i: (i, 0)),
        ),
        compiler_params=pltpu.CompilerParams(
            dimension_semantics=("parallel",)),
    )(x, w1_bf, b1, w23_bf, b23, w4_bf, b4)


# ----------------------------------------------------------------------------
# Init + pure-JAX reference (matches PyTorch module semantics, unfused f32)
# ----------------------------------------------------------------------------
def init_params(key, D, H, L):
    ks = jax.random.split(key, 8)

    def lin(kw, kb, fan_in, fan_out):
        bound = 1.0 / np.sqrt(fan_in)
        w = jax.random.uniform(kw, (fan_in, fan_out), jnp.float32, -bound, bound)
        b = jax.random.uniform(kb, (1, fan_out), jnp.float32, -bound, bound)
        return w, b

    w1, b1 = lin(ks[0], ks[1], D, H)   # encoder layer 1
    w2, b2 = lin(ks[2], ks[3], H, L)   # encoder layer 2 (latent)
    w3, b3 = lin(ks[4], ks[5], L, H)   # decoder layer 1
    w4, b4 = lin(ks[6], ks[7], H, D)   # decoder layer 2
    return (w1, b1, w2, b2, w3, b3, w4, b4)


def reference_forward(x, params):
    (w1, b1, w2, b2, w3, b3, w4, b4) = params
    h = jnp.maximum(x @ w1 + b1, 0.0)
    z = h @ w2 + b2
    h2 = jnp.maximum(z @ w3 + b3, 0.0)
    return jax.nn.sigmoid(h2 @ w4 + b4)


if __name__ == "__main__":
    key = jax.random.PRNGKey(0)
    k_x, k_p = jax.random.split(key)

    # batch, input dim, hidden dim, latent dim (lane-friendly multiples of 128)
    B, D, H, L = 256, 256, 128, 32
    x = jax.random.normal(k_x, (B, D), dtype=jnp.float32)
    params = init_params(k_p, D, H, L)

    # One-time parameter prep (fusion + bf16 casts) — off the hot path.
    prepped = prepare_params(params)

    out = autoencoder_forward(x, prepped)
    out = jax.block_until_ready(out)

    ref = jax.block_until_ready(reference_forward(x, params))
    assert out.shape == (B, D)
    # bf16 MXU operands + fused w2@w3 + approx reciprocal change rounding;
    # sigmoid output lives in (0,1) so ~3e-2 is a tight check.
    np.testing.assert_allclose(np.asarray(out), np.asarray(ref),
                               rtol=3e-2, atol=3e-2)
    print("KERNEL_OK")
</pallas_src>

<mosaic_0001>
module attributes {stable_mosaic.version = 11 : i64} {
  func.func @ae_kernel(%arg0: i32, %arg1: memref<256x256xf32, #tpu.memory_space<vmem>>, %arg2: memref<256x128xbf16, #tpu.memory_space<vmem>>, %arg3: memref<1x128xf32, #tpu.memory_space<vmem>>, %arg4: memref<128x128xbf16, #tpu.memory_space<vmem>>, %arg5: memref<1x128xf32, #tpu.memory_space<vmem>>, %arg6: memref<128x256xbf16, #tpu.memory_space<vmem>>, %arg7: memref<1x256xf32, #tpu.memory_space<vmem>>, %arg8: memref<256x256xf32, #tpu.memory_space<vmem>>) attributes {dimension_semantics = [#tpu.dimension_semantics<parallel>], iteration_bounds = array<i64: 1>, scalar_prefetch = 0 : i64, scratch_operands = 0 : i64, tpu.core_type = #tpu.core_type<tc>, window_params = [{transform_indices = @transform_0, window_bounds = array<i64: 256, 256>}, {pipeline_mode = #tpu.pipeline_mode<synchronous>, transform_indices = @transform_1, window_bounds = array<i64: 256, 128>}, {pipeline_mode = #tpu.pipeline_mode<synchronous>, transform_indices = @transform_2, window_bounds = array<i64: 1, 128>}, {pipeline_mode = #tpu.pipeline_mode<synchronous>, transform_indices = @transform_3, window_bounds = array<i64: 128, 128>}, {pipeline_mode = #tpu.pipeline_mode<synchronous>, transform_indices = @transform_4, window_bounds = array<i64: 1, 128>}, {pipeline_mode = #tpu.pipeline_mode<synchronous>, transform_indices = @transform_5, window_bounds = array<i64: 128, 256>}, {pipeline_mode = #tpu.pipeline_mode<synchronous>, transform_indices = @transform_6, window_bounds = array<i64: 1, 256>}, {transform_indices = @transform_7, window_bounds = array<i64: 256, 256>}]} {
    %c0 = arith.constant 0 : index
    %c0_0 = arith.constant 0 : index
    %0 = vector.load %arg1[%c0, %c0_0] : memref<256x256xf32, #tpu.memory_space<vmem>>, vector<256x256xf32>
    %1 = arith.truncf %0 : vector<256x256xf32> to vector<256x256xbf16>
    %c0_1 = arith.constant 0 : index
    %c0_2 = arith.constant 0 : index
    %2 = vector.load %arg2[%c0_1, %c0_2] : memref<256x128xbf16, #tpu.memory_space<vmem>>, vector<256x128xbf16>
    %cst = arith.constant dense<0.000000e+00> : vector<256x128xf32>
    %3 = tpu.matmul %1, %2, %cst {dimension_numbers = #tpu.dot_dimension_numbers<[1], [0], [0], [1], [0, 0, 1, 1], [], []>} : vector<256x256xbf16>, vector<256x128xbf16>, vector<256x128xf32> -> vector<256x128xf32>
    %c0_3 = arith.constant 0 : index
    %c0_4 = arith.constant 0 : index
    %4 = vector.load %arg3[%c0_3, %c0_4] : memref<1x128xf32, #tpu.memory_space<vmem>>, vector<1x128xf32>
    %5 = vector.broadcast %4 : vector<1x128xf32> to vector<256x128xf32>
    %6 = arith.addf %3, %5 : vector<256x128xf32>
    %cst_5 = arith.constant 0.000000e+00 : f32
    %7 = vector.broadcast %cst_5 : f32 to vector<256x128xf32>
    %8 = arith.maximumf %6, %7 : vector<256x128xf32>
    %9 = arith.truncf %8 : vector<256x128xf32> to vector<256x128xbf16>
    %c0_6 = arith.constant 0 : index
    %c0_7 = arith.constant 0 : index
    %10 = vector.load %arg4[%c0_6, %c0_7] : memref<128x128xbf16, #tpu.memory_space<vmem>>, vector<128x128xbf16>
    %cst_8 = arith.constant dense<0.000000e+00> : vector<256x128xf32>
    %11 = tpu.matmul %9, %10, %cst_8 {dimension_numbers = #tpu.dot_dimension_numbers<[1], [0], [0], [1], [0, 0, 1, 1], [], []>} : vector<256x128xbf16>, vector<128x128xbf16>, vector<256x128xf32> -> vector<256x128xf32>
    %c0_9 = arith.constant 0 : index
    %c0_10 = arith.constant 0 : index
    %12 = vector.load %arg5[%c0_9, %c0_10] : memref<1x128xf32, #tpu.memory_space<vmem>>, vector<1x128xf32>
    %13 = vector.broadcast %12 : vector<1x128xf32> to vector<256x128xf32>
    %14 = arith.addf %11, %13 : vector<256x128xf32>
    %cst_11 = arith.constant 0.000000e+00 : f32
    %15 = vector.broadcast %cst_11 : f32 to vector<256x128xf32>
    %16 = arith.maximumf %14, %15 : vector<256x128xf32>
    %17 = arith.truncf %16 : vector<256x128xf32> to vector<256x128xbf16>
    %c0_12 = arith.constant 0 : index
    %c0_13 = arith.constant 0 : index
    %18 = vector.load %arg6[%c0_12, %c0_13] : memref<128x256xbf16, #tpu.memory_space<vmem>>, vector<128x256xbf16>
    %cst_14 = arith.constant dense<0.000000e+00> : vector<256x256xf32>
    %19 = tpu.matmul %17, %18, %cst_14 {dimension_numbers = #tpu.dot_dimension_numbers<[1], [0], [0], [1], [0, 0, 1, 1], [], []>} : vector<256x128xbf16>, vector<128x256xbf16>, vector<256x256xf32> -> vector<256x256xf32>
    %c0_15 = arith.constant 0 : index
    %c0_16 = arith.constant 0 : index
    %20 = vector.load %arg7[%c0_15, %c0_16] : memref<1x256xf32, #tpu.memory_space<vmem>>, vector<1x256xf32>
    %21 = vector.broadcast %20 : vector<1x256xf32> to vector<256x256xf32>
    %22 = arith.addf %19, %21 : vector<256x256xf32>
    %cst_17 = arith.constant 0.000000e+00 : f32
    %23 = vector.broadcast %cst_17 : f32 to vector<256x256xf32>
    %24 = arith.subf %23, %22 : vector<256x256xf32>
    %25 = math.exp %24 : vector<256x256xf32>
    %cst_18 = arith.constant 1.000000e+00 : f32
    %26 = vector.broadcast %cst_18 : f32 to vector<256x256xf32>
    %27 = arith.addf %26, %25 : vector<256x256xf32>
    %28 = tpu.reciprocal %27 {approx = true} : vector<256x256xf32> -> vector<256x256xf32>
    %c0_19 = arith.constant 0 : index
    %c0_20 = arith.constant 0 : index
    %29 = vector.load %arg8[%c0_19, %c0_20] : memref<256x256xf32, #tpu.memory_space<vmem>>, vector<256x256xf32>
    tpu.vector_store %arg8[%c0_19, %c0_20], %28 {strides = array<i32>} : memref<256x256xf32, #tpu.memory_space<vmem>>, vector<256x256xf32>,
    return
  }
  func.func @transform_0(%arg0: i32) -> (i32, i32) {
    %c0_i32 = arith.constant 0 : i32
    %c0_i32_0 = arith.constant 0 : i32
    return %arg0, %c0_i32 : i32, i32
  }
  func.func @transform_1(%arg0: i32) -> (i32, i32) {
    %c0_i32 = arith.constant 0 : i32
    %c0_i32_0 = arith.constant 0 : i32
    %c0_i32_1 = arith.constant 0 : i32
    return %c0_i32, %c0_i32_0 : i32, i32
  }
  func.func @transform_2(%arg0: i32) -> (i32, i32) {
    %c0_i32 = arith.constant 0 : i32
    %c0_i32_0 = arith.constant 0 : i32
    %c0_i32_1 = arith.constant 0 : i32
    return %c0_i32, %c0_i32_0 : i32, i32
  }
  func.func @transform_3(%arg0: i32) -> (i32, i32) {
    %c0_i32 = arith.constant 0 : i32
    %c0_i32_0 = arith.constant 0 : i32
    %c0_i32_1 = arith.constant 0 : i32
    return %c0_i32, %c0_i32_0 : i32, i32
  }
  func.func @transform_4(%arg0: i32) -> (i32, i32) {
    %c0_i32 = arith.constant 0 : i32
    %c0_i32_0 = arith.constant 0 : i32
    %c0_i32_1 = arith.constant 0 : i32
    return %c0_i32, %c0_i32_0 : i32, i32
  }
  func.func @transform_5(%arg0: i32) -> (i32, i32) {
    %c0_i32 = arith.constant 0 : i32
    %c0_i32_0 = arith.constant 0 : i32
    %c0_i32_1 = arith.constant 0 : i32
    return %c0_i32, %c0_i32_0 : i32, i32
  }
  func.func @transform_6(%arg0: i32) -> (i32, i32) {
    %c0_i32 = arith.constant 0 : i32
    %c0_i32_0 = arith.constant 0 : i32
    %c0_i32_1 = arith.constant 0 : i32
    return %c0_i32, %c0_i32_0 : i32, i32
  }
  func.func @transform_7(%arg0: i32) -> (i32, i32) {
    %c0_i32 = arith.constant 0 : i32
    %c0_i32_0 = arith.constant 0 : i32
    return %arg0, %c0_i32 : i32, i32
  }
}

</mosaic_0001>

<llo_original>
// kernel: tpu_custom_call.1
$region0: #{tpu_custom_call.1}
  #allocation0 [shape = 'u32[]', space=smem, size = 0x4, offset = 0x4, fixed_abs, tag = 'smem constant byte address 0x4 - core index']
  #allocation1 [shape = 'u32[72,128]{1,0:T(1,128)}', space=vmem, size = 0x9000, scoped, tag = 'internal scratch']
  %s0 = inlined_call_operand.hbm [shape: f32[256,256], index: 0, kind: input, shape index: {}]
  %s1 = inlined_call_operand.hbm [shape: bf16[256,128], index: 1, kind: input, shape index: {}]
  %s2 = inlined_call_operand.vmem [shape: f32[1,128], index: 2, kind: input, shape index: {}]
  %s3 = inlined_call_operand.hbm [shape: bf16[128,128], index: 3, kind: input, shape index: {}]
  %s4 = inlined_call_operand.hbm [shape: f32[1,128], index: 4, kind: input, shape index: {}]
  %s5 = inlined_call_operand.hbm [shape: bf16[128,256], index: 5, kind: input, shape index: {}]
  %s6 = inlined_call_operand.vmem [shape: f32[1,256], index: 6, kind: input, shape index: {}]
  %s7 = inlined_call_operand.hbm [shape: f32[256,256], index: 7, kind: output, shape index: {}]
  %s8 = sld [smem:[#allocation0]]
  $region58: #{tpu_custom_call.1} parent=0
    _
  %s10 = ssub.s32 1, %s8
  %s11 = scalar_select 0, %s10, %s8
  $region1: #{tpu_custom_call.1} parent=0
    #allocation2 [shape = 'u8[262144]{0}', space=vmem, size = 0x40000, scoped, tag = 'input window, operand 0, single buffered']
    #allocation3 [shape = 's32[1]{0}', space=sflag, size = 0x4, scoped, tag = 'scoped memory for tpu_custom_call.1']
    #allocation4 [shape = 's32[1]{0}', space=sflag, size = 0x4, scoped, tag = 'scoped memory for tpu_custom_call.1']
    #allocation5 [shape = 'u8[65536]{0}', space=vmem, size = 0x10000, scoped, tag = 'input window, operand 1, single buffered']
    #allocation6 [shape = 's32[1]{0}', space=sflag, size = 0x4, scoped, tag = 'scoped memory for tpu_custom_call.1']
    #allocation7 [shape = 'u8[32768]{0}', space=vmem, size = 0x8000, scoped, tag = 'input window, operand 3, single buffered']
    #allocation8 [shape = 'u8[512]{0}', space=vmem, size = 0x400, scoped, tag = 'input window, operand 4, single buffered']
    #allocation9 [shape = 's32[1]{0}', space=sflag, size = 0x4, scoped, tag = 'scoped memory for tpu_custom_call.1']
    #allocation10 [shape = 'u8[65536]{0}', space=vmem, size = 0x10000, scoped, tag = 'input window, operand 5, single buffered']
    #allocation11 [shape = 'u8[262144]{0}', space=vmem, size = 0x40000, scoped, tag = 'output window, operand 0, single buffered']
    %12 = vsyncpa [#allocation3], 0
    %13 = vsyncpa [#allocation6], 0
    %14 = vsyncpa [#allocation9], 0
    %15 = vsyncpa [#allocation4], 0
    // Predicated region
    $region2: #{tpu_custom_call.1} parent=1 // pred_check
      _
    $region3: #{tpu_custom_call.1} parent=1 // pred_check_branch
      %17 = sbr.rel (0) target = $region5
    $region4: #{tpu_custom_call.1} parent=1 // pred_region
      %19 = vsyncadd [#allocation3], 0
      %s20 = sshll.u32 %s0, 4
      %s21 = int_to_ptr.hbm [resolvable:$true] %s20
      %s22 = sshll.u32 [#allocation2], 4
      %s23 = int_to_ptr.vmem [resolvable:$true] %s22
      %28 = dma.hbm_to_vmem [thread:$0]  %s21, 8192, %s23, [#allocation3], 256, 256, 16
    $region5: #{tpu_custom_call.1} parent=1 // pred_fallthru
      _
    // Predicated region
    $region6: #{tpu_custom_call.1} parent=1 // pred_check
      _
    $region7: #{tpu_custom_call.1} parent=1 // pred_check_branch
      %30 = sbr.rel (0) target = $region9
    $region8: #{tpu_custom_call.1} parent=1 // pred_region
      %32 = vsyncadd [#allocation6], 0
      %s33 = sshll.u32 %s1, 4
      %s34 = int_to_ptr.hbm [resolvable:$true] %s33
      %s35 = sshll.u32 [#allocation5], 4
      %s36 = int_to_ptr.vmem [resolvable:$true] %s35
      %41 = dma.hbm_to_vmem [thread:$0]  %s34, 2048, %s36, [#allocation6], 64, 64, 4
    $region9: #{tpu_custom_call.1} parent=1 // pred_fallthru
      _
    // Predicated region
    $region10: #{tpu_custom_call.1} parent=1 // pred_check
      _
    $region11: #{tpu_custom_call.1} parent=1 // pred_check_branch
      %43 = sbr.rel (0) target = $region13
    $region12: #{tpu_custom_call.1} parent=1 // pred_region
      _
    $region13: #{tpu_custom_call.1} parent=1 // pred_fallthru
      _
    // Predicated region
    $region14: #{tpu_custom_call.1} parent=1 // pred_check
      _
    $region15: #{tpu_custom_call.1} parent=1 // pred_check_branch
      %45 = sbr.rel (0) target = $region17
    $region16: #{tpu_custom_call.1} parent=1 // pred_region
      %47 = vsyncadd [#allocation6], 0
      %s48 = sshll.u32 %s3, 4
      %s49 = int_to_ptr.hbm [resolvable:$true] %s48
      %s50 = sshll.u32 [#allocation7], 4
      %s51 = int_to_ptr.vmem [resolvable:$true] %s50
      %56 = dma.hbm_to_vmem [thread:$0]  %s49, 1024, %s51, [#allocation6], 64, 64, 4
    $region17: #{tpu_custom_call.1} parent=1 // pred_fallthru
      _
    // Predicated region
    $region18: #{tpu_custom_call.1} parent=1 // pred_check
      _
    $region19: #{tpu_custom_call.1} parent=1 // pred_check_branch
      %58 = sbr.rel (0) target = $region21
    $region20: #{tpu_custom_call.1} parent=1 // pred_region
      %60 = vsyncadd [#allocation9], 0
      %s62 = sshll.u32 %s4, 4
      %s63 = int_to_ptr.hbm [resolvable:$true] %s62
      %s64 = sshll.u32 [#allocation8], 4
      %s65 = int_to_ptr.vmem [resolvable:$true] %s64
      %67 = dma.hbm_to_vmem [thread:$0]  %s63, 16, %s65, [#allocation9]
    $region21: #{tpu_custom_call.1} parent=1 // pred_fallthru
      _
    // Predicated region
    $region22: #{tpu_custom_call.1} parent=1 // pred_check
      _
    $region23: #{tpu_custom_call.1} parent=1 // pred_check_branch
      %69 = sbr.rel (0) target = $region25
    $region24: #{tpu_custom_call.1} parent=1 // pred_region
      %71 = vsyncadd [#allocation9], 0
      %s72 = sshll.u32 %s5, 4
      %s73 = int_to_ptr.hbm [resolvable:$true] %s72
      %s74 = sshll.u32 [#allocation10], 4
      %s75 = int_to_ptr.vmem [resolvable:$true] %s74
      %80 = dma.hbm_to_vmem [thread:$0]  %s73, 2048, %s75, [#allocation9], 128, 128, 8
    $region25: #{tpu_custom_call.1} parent=1 // pred_fallthru
      _
    // Predicated region
    $region26: #{tpu_custom_call.1} parent=1 // pred_check
      _
    $region27: #{tpu_custom_call.1} parent=1 // pred_check_branch
      %82 = sbr.rel (0) target = $region29
    $region28: #{tpu_custom_call.1} parent=1 // pred_region
      _
    $region29: #{tpu_custom_call.1} parent=1 // pred_fallthru
      _
    // Predicated region
    $region30: #{tpu_custom_call.1} parent=1 // pred_check
      _
    $region31: #{tpu_custom_call.1} parent=1 // pred_check_branch
      %84 = sbr.rel (0) target = $region33
    $region32: #{tpu_custom_call.1} parent=1 // pred_region
      %86 = dma.done [#allocation3], 8192
    $region33: #{tpu_custom_call.1} parent=1 // pred_fallthru
      _
    // Predicated region
    $region34: #{tpu_custom_call.1} parent=1 // pred_check
      _
    $region35: #{tpu_custom_call.1} parent=1 // pred_check_branch
      %88 = sbr.rel (0) target = $region37
    $region36: #{tpu_custom_call.1} parent=1 // pred_region
      %90 = dma.done [#allocation6], 2048
    $region37: #{tpu_custom_call.1} parent=1 // pred_fallthru
      _
    // Predicated region
    $region38: #{tpu_custom_call.1} parent=1 // pred_check
      _
    $region39: #{tpu_custom_call.1} parent=1 // pred_check_branch
      %92 = sbr.rel (0) target = $region41
    $region40: #{tpu_custom_call.1} parent=1 // pred_region
      %94 = dma.done [#allocation6], 1024
    $region41: #{tpu_custom_call.1} parent=1 // pred_fallthru
      _
    // Predicated region
    $region42: #{tpu_custom_call.1} parent=1 // pred_check
      _
    $region43: #{tpu_custom_call.1} parent=1 // pred_check_branch
      %96 = sbr.rel (0) target = $region45
    $region44: #{tpu_custom_call.1} parent=1 // pred_region
      %98 = dma.done [#allocation9], 16
    $region45: #{tpu_custom_call.1} parent=1 // pred_fallthru
      _
    // Predicated region
    $region46: #{tpu_custom_call.1} parent=1 // pred_check
      _
    $region47: #{tpu_custom_call.1} parent=1 // pred_check_branch
      %100 = sbr.rel (0) target = $region49
    $region48: #{tpu_custom_call.1} parent=1 // pred_region
      %102 = dma.done [#allocation9], 2048
    $region49: #{tpu_custom_call.1} parent=1 // pred_fallthru
      _
    %v103 = vld [vmem:[#allocation2] sm:$0xff]
    %v104 = vld [vmem:[#allocation2 + $0x8] sm:$0xff]
    %v105 = vld [vmem:[#allocation2 + $0x10] sm:$0xff]
    %v106 = vld [vmem:[#allocation2 + $0x18] sm:$0xff]
    %v107 = vld [vmem:[#allocation2 + $0x20] sm:$0xff]
    %v108 = vld [vmem:[#allocation2 + $0x28] sm:$0xff]
    %v109 = vld [vmem:[#allocation2 + $0x30] sm:$0xff]
    %v110 = vld [vmem:[#allocation2 + $0x38] sm:$0xff]
    %v111 = vld [vmem:[#allocation2 + $0x40] sm:$0xff]
    %v112 = vld [vmem:[#allocation2 + $0x48] sm:$0xff]
    %v113 = vld [vmem:[#allocation2 + $0x50] sm:$0xff]
    %v114 = vld [vmem:[#allocation2 + $0x58] sm:$0xff]
    %v115 = vld [vmem:[#allocation2 + $0x60] sm:$0xff]
    %v116 = vld [vmem:[#allocation2 + $0x68] sm:$0xff]
    %v117 = vld [vmem:[#allocation2 + $0x70] sm:$0xff]
    %v118 = vld [vmem:[#allocation2 + $0x78] sm:$0xff]
    %v119 = vld [vmem:[#allocation2 + $0x80] sm:$0xff]
    %v120 = vld [vmem:[#allocation2 + $0x88] sm:$0xff]
    %v121 = vld [vmem:[#allocation2 + $0x90] sm:$0xff]
    %v122 = vld [vmem:[#allocation2 + $0x98] sm:$0xff]
    %v123 = vld [vmem:[#allocation2 + $0xa0] sm:$0xff]
    %v124 = vld [vmem:[#allocation2 + $0xa8] sm:$0xff]
    %v125 = vld [vmem:[#allocation2 + $0xb0] sm:$0xff]
    %v126 = vld [vmem:[#allocation2 + $0xb8] sm:$0xff]
    %v127 = vld [vmem:[#allocation2 + $0xc0] sm:$0xff]
    %v128 = vld [vmem:[#allocation2 + $0xc8] sm:$0xff]
    %v129 = vld [vmem:[#allocation2 + $0xd0] sm:$0xff]
    %v130 = vld [vmem:[#allocation2 + $0xd8] sm:$0xff]
    %v131 = vld [vmem:[#allocation2 + $0xe0] sm:$0xff]
    %v132 = vld [vmem:[#allocation2 + $0xe8] sm:$0xff]
    %v133 = vld [vmem:[#allocation2 + $0xf0] sm:$0xff]
    %v134 = vld [vmem:[#allocation2 + $0xf8] sm:$0xff]
    %v135 = vld [vmem:[#allocation2 + $0x100] sm:$0xff]
    %v136 = vld [vmem:[#allocation2 + $0x108] sm:$0xff]
    %v137 = vld [vmem:[#allocation2 + $0x110] sm:$0xff]
    %v138 = vld [vmem:[#allocation2 + $0x118] sm:$0xff]
    %v139 = vld [vmem:[#allocation2 + $0x120] sm:$0xff]
    %v140 = vld [vmem:[#allocation2 + $0x128] sm:$0xff]
    %v141 = vld [vmem:[#allocation2 + $0x130] sm:$0xff]
    %v142 = vld [vmem:[#allocation2 + $0x138] sm:$0xff]
    %v143 = vld [vmem:[#allocation2 + $0x140] sm:$0xff]
    %v144 = vld [vmem:[#allocation2 + $0x148] sm:$0xff]
    %v145 = vld [vmem:[#allocation2 + $0x150] sm:$0xff]
    %v146 = vld [vmem:[#allocation2 + $0x158] sm:$0xff]
    %v147 = vld [vmem:[#allocation2 + $0x160] sm:$0xff]
    %v148 = vld [vmem:[#allocation2 + $0x168] sm:$0xff]
    %v149 = vld [vmem:[#allocation2 + $0x170] sm:$0xff]
    %v150 = vld [vmem:[#allocation2 + $0x178] sm:$0xff]
    %v151 = vld [vmem:[#allocation2 + $0x180] sm:$0xff]
    %v152 = vld [vmem:[#allocation2 + $0x188] sm:$0xff]
    %v153 = vld [vmem:[#allocation2 + $0x190] sm:$0xff]
    %v154 = vld [vmem:[#allocation2 + $0x198] sm:$0xff]
    %v155 = vld [vmem:[#allocation2 + $0x1a0] sm:$0xff]
    %v156 = vld [vmem:[#allocation2 + $0x1a8] sm:$0xff]
    %v157 = vld [vmem:[#allocation2 + $0x1b0] sm:$0xff]
    %v158 = vld [vmem:[#allocation2 + $0x1b8] sm:$0xff]
    %v159 = vld [vmem:[#allocation2 + $0x1c0] sm:$0xff]
    %v160 = vld [vmem:[#allocation2 + $0x1c8] sm:$0xff]
    %v161 = vld [vmem:[#allocation2 + $0x1d0] sm:$0xff]
    %v162 = vld [vmem:[#allocation2 + $0x1d8] sm:$0xff]
    %v163 = vld [vmem:[#allocation2 + $0x1e0] sm:$0xff]
    %v164 = vld [vmem:[#allocation2 + $0x1e8] sm:$0xff]
    %v165 = vld [vmem:[#allocation2 + $0x1f0] sm:$0xff]
    %v166 = vld [vmem:[#allocation2 + $0x1f8] sm:$0xff]
    %v167 = vpack.c.bf16 %v105, %v103
    %v168 = vpack.c.bf16 %v106, %v104
    %v169 = vpack.c.bf16 %v109, %v107
    %v170 = vpack.c.bf16 %v110, %v108
    %v171 = vpack.c.bf16 %v113, %v111
    %v172 = vpack.c.bf16 %v114, %v112
    %v173 = vpack.c.bf16 %v117, %v115
    %v174 = vpack.c.bf16 %v118, %v116
    %v175 = vpack.c.bf16 %v121, %v119
    %v176 = vpack.c.bf16 %v122, %v120
    %v177 = vpack.c.bf16 %v125, %v123
    %v178 = vpack.c.bf16 %v126, %v124
    %v179 = vpack.c.bf16 %v129, %v127
    %v180 = vpack.c.bf16 %v130, %v128
    %v181 = vpack.c.bf16 %v133, %v131
    %v182 = vpack.c.bf16 %v134, %v132
    %v183 = vpack.c.bf16 %v137, %v135
    %v184 = vpack.c.bf16 %v138, %v136
    %v185 = vpack.c.bf16 %v141, %v139
    %v186 = vpack.c.bf16 %v142, %v140
    %v187 = vpack.c.bf16 %v145, %v143
    %v188 = vpack.c.bf16 %v146, %v144
    %v189 = vpack.c.bf16 %v149, %v147
    %v190 = vpack.c.bf16 %v150, %v148
    %v191 = vpack.c.bf16 %v153, %v151
    %v192 = vpack.c.bf16 %v154, %v152
    %v193 = vpack.c.bf16 %v157, %v155
    %v194 = vpack.c.bf16 %v158, %v156
    %v195 = vpack.c.bf16 %v161, %v159
    %v196 = vpack.c.bf16 %v162, %v160
    %v197 = vpack.c.bf16 %v165, %v163
    %v198 = vpack.c.bf16 %v166, %v164
    %v199 = vld [vmem:[#allocation5] sm:$0xf]
    %v200 = vld [vmem:[#allocation5 + $0x4] sm:$0xf]
    %v201 = vld [vmem:[#allocation5 + $0x8] sm:$0xf]
    %v202 = vld [vmem:[#allocation5 + $0xc] sm:$0xf]
    %v203 = vld [vmem:[#allocation5 + $0x10] sm:$0xf]
    %v204 = vld [vmem:[#allocation5 + $0x14] sm:$0xf]
    %v205 = vld [vmem:[#allocation5 + $0x18] sm:$0xf]
    %v206 = vld [vmem:[#allocation5 + $0x1c] sm:$0xf]
    %v207 = vld [vmem:[#allocation5 + $0x20] sm:$0xf]
    %v208 = vld [vmem:[#allocation5 + $0x24] sm:$0xf]
    %v209 = vld [vmem:[#allocation5 + $0x28] sm:$0xf]
    %v210 = vld [vmem:[#allocation5 + $0x2c] sm:$0xf]
    %v211 = vld [vmem:[#allocation5 + $0x30] sm:$0xf]
    %v212 = vld [vmem:[#allocation5 + $0x34] sm:$0xf]
    %v213 = vld [vmem:[#allocation5 + $0x38] sm:$0xf]
    %v214 = vld [vmem:[#allocation5 + $0x3c] sm:$0xf]
    %v215 = vld [vmem:[#allocation5 + $0x40] sm:$0xf]
    %v216 = vld [vmem:[#allocation5 + $0x44] sm:$0xf]
    %v217 = vld [vmem:[#allocation5 + $0x48] sm:$0xf]
    %v218 = vld [vmem:[#allocation5 + $0x4c] sm:$0xf]
    %v219 = vld [vmem:[#allocation5 + $0x50] sm:$0xf]
    %v220 = vld [vmem:[#allocation5 + $0x54] sm:$0xf]
    %v221 = vld [vmem:[#allocation5 + $0x58] sm:$0xf]
    %v222 = vld [vmem:[#allocation5 + $0x5c] sm:$0xf]
    %v223 = vld [vmem:[#allocation5 + $0x60] sm:$0xf]
    %v224 = vld [vmem:[#allocation5 + $0x64] sm:$0xf]
    %v225 = vld [vmem:[#allocation5 + $0x68] sm:$0xf]
    %v226 = vld [vmem:[#allocation5 + $0x6c] sm:$0xf]
    %v227 = vld [vmem:[#allocation5 + $0x70] sm:$0xf]
    %v228 = vld [vmem:[#allocation5 + $0x74] sm:$0xf]
    %v229 = vld [vmem:[#allocation5 + $0x78] sm:$0xf]
    %v230 = vld [vmem:[#allocation5 + $0x7c] sm:$0xf]
    %v231 = vld [vmem:[%s2] sm:$0x1]
    %v233 = vperm.slane %v231, 0
    %v267 = vunpack.c.l.b16 %v199
    %v268 = vunpack.c.l.b16 %v200
    %v269 = vunpack.c.l.b16 %v201
    %v270 = vunpack.c.l.b16 %v202
    %v271 = vunpack.c.l.b16 %v203
    %v272 = vunpack.c.l.b16 %v204
    %v273 = vunpack.c.l.b16 %v205
    %v274 = vunpack.c.l.b16 %v206
    %v275 = vunpack.c.l.b16 %v207
    %v276 = vunpack.c.l.b16 %v208
    %v277 = vunpack.c.l.b16 %v209
    %v278 = vunpack.c.l.b16 %v210
    %v279 = vunpack.c.l.b16 %v211
    %v280 = vunpack.c.l.b16 %v212
    %v281 = vunpack.c.l.b16 %v213
    %v282 = vunpack.c.l.b16 %v214
    %v283 = vunpack.c.l.b16 %v215
    %v284 = vunpack.c.l.b16 %v216
    %v285 = vunpack.c.l.b16 %v217
    %v286 = vunpack.c.l.b16 %v218
    %v287 = vunpack.c.l.b16 %v219
    %v288 = vunpack.c.l.b16 %v220
    %v289 = vunpack.c.l.b16 %v221
    %v290 = vunpack.c.l.b16 %v222
    %v291 = vunpack.c.l.b16 %v223
    %v292 = vunpack.c.l.b16 %v224
    %v293 = vunpack.c.l.b16 %v225
    %v294 = vunpack.c.l.b16 %v226
    %v295 = vunpack.c.l.b16 %v227
    %v296 = vunpack.c.l.b16 %v228
    %v297 = vunpack.c.l.b16 %v229
    %v298 = vunpack.c.l.b16 %v230
    %v299 = vpack.c.b16 %v268, %v267
    %v300 = vpack.c.b16 %v270, %v269
    %v301 = vpack.c.b16 %v272, %v271
    %v302 = vpack.c.b16 %v274, %v273
    %v303 = vpack.c.b16 %v276, %v275
    %v304 = vpack.c.b16 %v278, %v277
    %v305 = vpack.c.b16 %v280, %v279
    %v306 = vpack.c.b16 %v282, %v281
    %v307 = vpack.c.b16 %v284, %v283
    %v308 = vpack.c.b16 %v286, %v285
    %v309 = vpack.c.b16 %v288, %v287
    %v310 = vpack.c.b16 %v290, %v289
    %v311 = vpack.c.b16 %v292, %v291
    %v312 = vpack.c.b16 %v294, %v293
    %v313 = vpack.c.b16 %v296, %v295
    %v314 = vpack.c.b16 %v298, %v297
    %331 = vmatpush.bf16.msra.mxu0 %v306
    %332 = vmatpush.bf16.msra.mxu0 %v305
    %333 = vmatpush.bf16.msra.mxu0 %v304
    %334 = vmatpush.bf16.msra.mxu0 %v303
    %335 = vmatpush.bf16.msra.mxu0 %v302
    %336 = vmatpush.bf16.msra.mxu0 %v301
    %337 = vmatpush.bf16.msra.mxu0 %v300
    %338 = vmatpush.bf16.msra.mxu0 %v299
    %339 = vmatmul.bf16.gmra.mxu0 %v167
    %v340 = vpop.f32.mrf.mxu0
    %v341 = vadd.f32 %v233, %v340
    %v342 = vpop.f32.mrf.mxu0
    %v343 = vadd.f32 %v233, %v342
    %344 = vmatmul.bf16.gmra.mxu0 %v169
    %v345 = vpop.f32.mrf.mxu0
    %v346 = vadd.f32 %v233, %v345
    %v347 = vpop.f32.mrf.mxu0
    %v348 = vadd.f32 %v233, %v347
    %349 = vmatmul.bf16.gmra.mxu0 %v171
    %v350 = vpop.f32.mrf.mxu0
    %v351 = vadd.f32 %v233, %v350
    %v352 = vpop.f32.mrf.mxu0
    %v353 = vadd.f32 %v233, %v352
    %354 = vmatmul.bf16.gmra.mxu0 %v173
    %v355 = vpop.f32.mrf.mxu0
    %v356 = vadd.f32 %v233, %v355
    %v357 = vpop.f32.mrf.mxu0
    %v358 = vadd.f32 %v233, %v357
    %359 = vmatmul.bf16.gmra.mxu0 %v175
    %v360 = vpop.f32.mrf.mxu0
    %v361 = vadd.f32 %v233, %v360
    %v362 = vpop.f32.mrf.mxu0
    %v363 = vadd.f32 %v233, %v362
    %364 = vmatmul.bf16.gmra.mxu0 %v177
    %v365 = vpop.f32.mrf.mxu0
    %v366 = vadd.f32 %v233, %v365
    %v367 = vpop.f32.mrf.mxu0
    %v368 = vadd.f32 %v233, %v367
    %369 = vmatmul.bf16.gmra.mxu0 %v179
    %v370 = vpop.f32.mrf.mxu0
    %v371 = vadd.f32 %v233, %v370
    %v372 = vpop.f32.mrf.mxu0
    %v373 = vadd.f32 %v233, %v372
    %374 = vmatmul.bf16.gmra.mxu0 %v181
    %v375 = vpop.f32.mrf.mxu0
    %v376 = vadd.f32 %v233, %v375
    %v377 = vpop.f32.mrf.mxu0
    %v378 = vadd.f32 %v233, %v377
    %379 = vmatmul.bf16.gmra.mxu0 %v183
    %v380 = vpop.f32.mrf.mxu0
    %v381 = vadd.f32 %v233, %v380
    %v382 = vpop.f32.mrf.mxu0
    %v383 = vadd.f32 %v233, %v382
    %384 = vmatmul.bf16.gmra.mxu0 %v185
    %v385 = vpop.f32.mrf.mxu0
    %v386 = vadd.f32 %v233, %v385
    %v387 = vpop.f32.mrf.mxu0
    %v388 = vadd.f32 %v233, %v387
    %389 = vmatmul.bf16.gmra.mxu0 %v187
    %v390 = vpop.f32.mrf.mxu0
    %v391 = vadd.f32 %v233, %v390
    %v392 = vpop.f32.mrf.mxu0
    %v393 = vadd.f32 %v233, %v392
    %394 = vmatmul.bf16.gmra.mxu0 %v189
    %v395 = vpop.f32.mrf.mxu0
    %v396 = vadd.f32 %v233, %v395
    %v397 = vpop.f32.mrf.mxu0
    %v398 = vadd.f32 %v233, %v397
    %399 = vmatmul.bf16.gmra.mxu0 %v191
    %v400 = vpop.f32.mrf.mxu0
    %v401 = vadd.f32 %v233, %v400
    %v402 = vpop.f32.mrf.mxu0
    %v403 = vadd.f32 %v233, %v402
    %404 = vmatmul.bf16.gmra.mxu0 %v193
    %v405 = vpop.f32.mrf.mxu0
    %v406 = vadd.f32 %v233, %v405
    %v407 = vpop.f32.mrf.mxu0
    %v408 = vadd.f32 %v233, %v407
    %409 = vmatmul.bf16.gmra.mxu0 %v195
    %v410 = vpop.f32.mrf.mxu0
    %v411 = vadd.f32 %v233, %v410
    %v412 = vpop.f32.mrf.mxu0
    %v413 = vadd.f32 %v233, %v412
    %414 = vmatmul.bf16.gmra.mxu0 %v197
    %v415 = vpop.f32.mrf.mxu0
    %v416 = vadd.f32 %v233, %v415
    %v417 = vpop.f32.mrf.mxu0
    %v418 = vadd.f32 %v233, %v417
    %419 = vdwg.mxu0
    %420 = vmatpush.bf16.msra.mxu0 %v314
    %421 = vmatpush.bf16.msra.mxu0 %v313
    %422 = vmatpush.bf16.msra.mxu0 %v312
    %423 = vmatpush.bf16.msra.mxu0 %v311
    %424 = vmatpush.bf16.msra.mxu0 %v310
    %425 = vmatpush.bf16.msra.mxu0 %v309
    %426 = vmatpush.bf16.msra.mxu0 %v308
    %427 = vmatpush.bf16.msra.mxu0 %v307
    %428 = vmatmul.bf16.gmra.mxu0 %v168
    %v429 = vpop.f32.mrf.mxu0
    %v430 = vadd.f32 %v341, %v429
    %v431 = vpop.f32.mrf.mxu0
    %v432 = vadd.f32 %v343, %v431
    %433 = vmatmul.bf16.gmra.mxu0 %v170
    %v434 = vpop.f32.mrf.mxu0
    %v435 = vadd.f32 %v346, %v434
    %v436 = vpop.f32.mrf.mxu0
    %v437 = vadd.f32 %v348, %v436
    %438 = vmatmul.bf16.gmra.mxu0 %v172
    %v439 = vpop.f32.mrf.mxu0
    %v440 = vadd.f32 %v351, %v439
    %v441 = vpop.f32.mrf.mxu0
    %v442 = vadd.f32 %v353, %v441
    %443 = vmatmul.bf16.gmra.mxu0 %v174
    %v444 = vpop.f32.mrf.mxu0
    %v445 = vadd.f32 %v356, %v444
    %v446 = vpop.f32.mrf.mxu0
    %v447 = vadd.f32 %v358, %v446
    %448 = vmatmul.bf16.gmra.mxu0 %v176
    %v449 = vpop.f32.mrf.mxu0
    %v450 = vadd.f32 %v361, %v449
    %v451 = vpop.f32.mrf.mxu0
    %v452 = vadd.f32 %v363, %v451
    %453 = vmatmul.bf16.gmra.mxu0 %v178
    %v454 = vpop.f32.mrf.mxu0
    %v455 = vadd.f32 %v366, %v454
    %v456 = vpop.f32.mrf.mxu0
    %v457 = vadd.f32 %v368, %v456
    %458 = vmatmul.bf16.gmra.mxu0 %v180
    %v459 = vpop.f32.mrf.mxu0
    %v460 = vadd.f32 %v371, %v459
    %v461 = vpop.f32.mrf.mxu0
    %v462 = vadd.f32 %v373, %v461
    %463 = vmatmul.bf16.gmra.mxu0 %v182
    %v464 = vpop.f32.mrf.mxu0
    %v465 = vadd.f32 %v376, %v464
    %v466 = vpop.f32.mrf.mxu0
    %v467 = vadd.f32 %v378, %v466
    %468 = vmatmul.bf16.gmra.mxu0 %v184
    %v469 = vpop.f32.mrf.mxu0
    %v470 = vadd.f32 %v381, %v469
    %v471 = vpop.f32.mrf.mxu0
    %v472 = vadd.f32 %v383, %v471
    %473 = vmatmul.bf16.gmra.mxu0 %v186
    %v474 = vpop.f32.mrf.mxu0
    %v475 = vadd.f32 %v386, %v474
    %v476 = vpop.f32.mrf.mxu0
    %v477 = vadd.f32 %v388, %v476
    %478 = vmatmul.bf16.gmra.mxu0 %v188
    %v479 = vpop.f32.mrf.mxu0
    %v480 = vadd.f32 %v391, %v479
    %v481 = vpop.f32.mrf.mxu0
    %v482 = vadd.f32 %v393, %v481
    %483 = vmatmul.bf16.gmra.mxu0 %v190
    %v484 = vpop.f32.mrf.mxu0
    %v485 = vadd.f32 %v396, %v484
    %v486 = vpop.f32.mrf.mxu0
    %v487 = vadd.f32 %v398, %v486
    %488 = vmatmul.bf16.gmra.mxu0 %v192
    %v489 = vpop.f32.mrf.mxu0
    %v490 = vadd.f32 %v401, %v489
    %v491 = vpop.f32.mrf.mxu0
    %v492 = vadd.f32 %v403, %v491
    %493 = vmatmul.bf16.gmra.mxu0 %v194
    %v494 = vpop.f32.mrf.mxu0
    %v495 = vadd.f32 %v406, %v494
    %v496 = vpop.f32.mrf.mxu0
    %v497 = vadd.f32 %v408, %v496
    %498 = vmatmul.bf16.gmra.mxu0 %v196
    %v499 = vpop.f32.mrf.mxu0
    %v500 = vadd.f32 %v411, %v499
    %v501 = vpop.f32.mrf.mxu0
    %v502 = vadd.f32 %v413, %v501
    %503 = vmatmul.bf16.gmra.mxu0 %v198
    %v504 = vpop.f32.mrf.mxu0
    %v505 = vadd.f32 %v416, %v504
    %v506 = vpop.f32.mrf.mxu0
    %v507 = vadd.f32 %v418, %v506
    %508 = vdwg.mxu0
    %v509 = vmax.f32 %v430, 0.0
    %v510 = vmax.f32 %v432, 0.0
    %v511 = vmax.f32 %v435, 0.0
    %v512 = vmax.f32 %v437, 0.0
    %v513 = vmax.f32 %v440, 0.0
    %v514 = vmax.f32 %v442, 0.0
    %v515 = vmax.f32 %v445, 0.0
    %v516 = vmax.f32 %v447, 0.0
    %v517 = vmax.f32 %v450, 0.0
    %v518 = vmax.f32 %v452, 0.0
    %v519 = vmax.f32 %v455, 0.0
    %v520 = vmax.f32 %v457, 0.0
    %v521 = vmax.f32 %v460, 0.0
    %v522 = vmax.f32 %v462, 0.0
    %v523 = vmax.f32 %v465, 0.0
    %v524 = vmax.f32 %v467, 0.0
    %v525 = vmax.f32 %v470, 0.0
    %v526 = vmax.f32 %v472, 0.0
    %v527 = vmax.f32 %v475, 0.0
    %v528 = vmax.f32 %v477, 0.0
    %v529 = vmax.f32 %v480, 0.0
    %v530 = vmax.f32 %v482, 0.0
    %v531 = vmax.f32 %v485, 0.0
    %v532 = vmax.f32 %v487, 0.0
    %v533 = vmax.f32 %v490, 0.0
    %v534 = vmax.f32 %v492, 0.0
    %v535 = vmax.f32 %v495, 0.0
    %v536 = vmax.f32 %v497, 0.0
    %v537 = vmax.f32 %v500, 0.0
    %v538 = vmax.f32 %v502, 0.0
    %v539 = vmax.f32 %v505, 0.0
    %v540 = vmax.f32 %v507, 0.0
    %v541 = vpack.c.bf16 %v510, %v509
    %v542 = vpack.c.bf16 %v512, %v511
    %v543 = vpack.c.bf16 %v514, %v513
    %v544 = vpack.c.bf16 %v516, %v515
    %v545 = vpack.c.bf16 %v518, %v517
    %v546 = vpack.c.bf16 %v520, %v519
    %v547 = vpack.c.bf16 %v522, %v521
    %v548 = vpack.c.bf16 %v524, %v523
    %v549 = vpack.c.bf16 %v526, %v525
    %v550 = vpack.c.bf16 %v528, %v527
    %v551 = vpack.c.bf16 %v530, %v529
    %v552 = vpack.c.bf16 %v532, %v531
    %v553 = vpack.c.bf16 %v534, %v533
    %v554 = vpack.c.bf16 %v536, %v535
    %v555 = vpack.c.bf16 %v538, %v537
    %v556 = vpack.c.bf16 %v540, %v539
    %v557 = vld [vmem:[#allocation7] sm:$0xf]
    %v558 = vld [vmem:[#allocation7 + $0x4] sm:$0xf]
    %v559 = vld [vmem:[#allocation7 + $0x8] sm:$0xf]
    %v560 = vld [vmem:[#allocation7 + $0xc] sm:$0xf]
    %v561 = vld [vmem:[#allocation7 + $0x10] sm:$0xf]
    %v562 = vld [vmem:[#allocation7 + $0x14] sm:$0xf]
    %v563 = vld [vmem:[#allocation7 + $0x18] sm:$0xf]
    %v564 = vld [vmem:[#allocation7 + $0x1c] sm:$0xf]
    %v565 = vld [vmem:[#allocation7 + $0x20] sm:$0xf]
    %v566 = vld [vmem:[#allocation7 + $0x24] sm:$0xf]
    %v567 = vld [vmem:[#allocation7 + $0x28] sm:$0xf]
    %v568 = vld [vmem:[#allocation7 + $0x2c] sm:$0xf]
    %v569 = vld [vmem:[#allocation7 + $0x30] sm:$0xf]
    %v570 = vld [vmem:[#allocation7 + $0x34] sm:$0xf]
    %v571 = vld [vmem:[#allocation7 + $0x38] sm:$0xf]
    %v572 = vld [vmem:[#allocation7 + $0x3c] sm:$0xf]
    %v573 = vld [vmem:[#allocation8] sm:$0x1]
    %v575 = vperm.slane %v573, 0
    %v593 = vunpack.c.l.b16 %v557
    %v594 = vunpack.c.l.b16 %v558
    %v595 = vunpack.c.l.b16 %v559
    %v596 = vunpack.c.l.b16 %v560
    %v597 = vunpack.c.l.b16 %v561
    %v598 = vunpack.c.l.b16 %v562
    %v599 = vunpack.c.l.b16 %v563
    %v600 = vunpack.c.l.b16 %v564
    %v601 = vunpack.c.l.b16 %v565
    %v602 = vunpack.c.l.b16 %v566
    %v603 = vunpack.c.l.b16 %v567
    %v604 = vunpack.c.l.b16 %v568
    %v605 = vunpack.c.l.b16 %v569
    %v606 = vunpack.c.l.b16 %v570
    %v607 = vunpack.c.l.b16 %v571
    %v608 = vunpack.c.l.b16 %v572
    %v609 = vpack.c.b16 %v594, %v593
    %v610 = vpack.c.b16 %v596, %v595
    %v611 = vpack.c.b16 %v598, %v597
    %v612 = vpack.c.b16 %v600, %v599
    %v613 = vpack.c.b16 %v602, %v601
    %v614 = vpack.c.b16 %v604, %v603
    %v615 = vpack.c.b16 %v606, %v605
    %v616 = vpack.c.b16 %v608, %v607
    %625 = vmatpush.bf16.msra.mxu0 %v616
    %626 = vmatpush.bf16.msra.mxu0 %v615
    %627 = vmatpush.bf16.msra.mxu0 %v614
    %628 = vmatpush.bf16.msra.mxu0 %v613
    %629 = vmatpush.bf16.msra.mxu0 %v612
    %630 = vmatpush.bf16.msra.mxu0 %v611
    %631 = vmatpush.bf16.msra.mxu0 %v610
    %632 = vmatpush.bf16.msra.mxu0 %v609
    %633 = vmatmul.bf16.gmra.mxu0 %v541
    %v634 = vpop.f32.mrf.mxu0
    %v635 = vadd.f32 %v575, %v634
    %v636 = vpop.f32.mrf.mxu0
    %v637 = vadd.f32 %v575, %v636
    %638 = vmatmul.bf16.gmra.mxu0 %v542
    %v639 = vpop.f32.mrf.mxu0
    %v640 = vadd.f32 %v575, %v639
    %v641 = vpop.f32.mrf.mxu0
    %v642 = vadd.f32 %v575, %v641
    %643 = vmatmul.bf16.gmra.mxu0 %v543
    %v644 = vpop.f32.mrf.mxu0
    %v645 = vadd.f32 %v575, %v644
    %v646 = vpop.f32.mrf.mxu0
    %v647 = vadd.f32 %v575, %v646
    %648 = vmatmul.bf16.gmra.mxu0 %v544
    %v649 = vpop.f32.mrf.mxu0
    %v650 = vadd.f32 %v575, %v649
    %v651 = vpop.f32.mrf.mxu0
    %v652 = vadd.f32 %v575, %v651
    %653 = vmatmul.bf16.gmra.mxu0 %v545
    %v654 = vpop.f32.mrf.mxu0
    %v655 = vadd.f32 %v575, %v654
    %v656 = vpop.f32.mrf.mxu0
    %v657 = vadd.f32 %v575, %v656
    %658 = vmatmul.bf16.gmra.mxu0 %v546
    %v659 = vpop.f32.mrf.mxu0
    %v660 = vadd.f32 %v575, %v659
    %v661 = vpop.f32.mrf.mxu0
    %v662 = vadd.f32 %v575, %v661
    %663 = vmatmul.bf16.gmra.mxu0 %v547
    %v664 = vpop.f32.mrf.mxu0
    %v665 = vadd.f32 %v575, %v664
    %v666 = vpop.f32.mrf.mxu0
    %v667 = vadd.f32 %v575, %v666
    %668 = vmatmul.bf16.gmra.mxu0 %v548
    %v669 = vpop.f32.mrf.mxu0
    %v670 = vadd.f32 %v575, %v669
    %v671 = vpop.f32.mrf.mxu0
    %v672 = vadd.f32 %v575, %v671
    %673 = vmatmul.bf16.gmra.mxu0 %v549
    %v674 = vpop.f32.mrf.mxu0
    %v675 = vadd.f32 %v575, %v674
    %v676 = vpop.f32.mrf.mxu0
    %v677 = vadd.f32 %v575, %v676
    %678 = vmatmul.bf16.gmra.mxu0 %v550
    %v679 = vpop.f32.mrf.mxu0
    %v680 = vadd.f32 %v575, %v679
    %v681 = vpop.f32.mrf.mxu0
    %v682 = vadd.f32 %v575, %v681
    %683 = vmatmul.bf16.gmra.mxu0 %v551
    %v684 = vpop.f32.mrf.mxu0
    %v685 = vadd.f32 %v575, %v684
    %v686 = vpop.f32.mrf.mxu0
    %v687 = vadd.f32 %v575, %v686
    %688 = vmatmul.bf16.gmra.mxu0 %v552
    %v689 = vpop.f32.mrf.mxu0
    %v690 = vadd.f32 %v575, %v689
    %v691 = vpop.f32.mrf.mxu0
    %v692 = vadd.f32 %v575, %v691
    %693 = vmatmul.bf16.gmra.mxu0 %v553
    %v694 = vpop.f32.mrf.mxu0
    %v695 = vadd.f32 %v575, %v694
    %v696 = vpop.f32.mrf.mxu0
    %v697 = vadd.f32 %v575, %v696
    %698 = vmatmul.bf16.gmra.mxu0 %v554
    %v699 = vpop.f32.mrf.mxu0
    %v700 = vadd.f32 %v575, %v699
    %v701 = vpop.f32.mrf.mxu0
    %v702 = vadd.f32 %v575, %v701
    %703 = vmatmul.bf16.gmra.mxu0 %v555
    %v704 = vpop.f32.mrf.mxu0
    %v705 = vadd.f32 %v575, %v704
    %v706 = vpop.f32.mrf.mxu0
    %v707 = vadd.f32 %v575, %v706
    %708 = vmatmul.bf16.gmra.mxu0 %v556
    %v709 = vpop.f32.mrf.mxu0
    %v710 = vadd.f32 %v575, %v709
    %v711 = vpop.f32.mrf.mxu0
    %v712 = vadd.f32 %v575, %v711
    %713 = vdwg.mxu0
    %v714 = vmax.f32 %v635, 0.0
    %v715 = vmax.f32 %v637, 0.0
    %v716 = vmax.f32 %v640, 0.0
    %v717 = vmax.f32 %v642, 0.0
    %v718 = vmax.f32 %v645, 0.0
    %v719 = vmax.f32 %v647, 0.0
    %v720 = vmax.f32 %v650, 0.0
    %v721 = vmax.f32 %v652, 0.0
    %v722 = vmax.f32 %v655, 0.0
    %v723 = vmax.f32 %v657, 0.0
    %v724 = vmax.f32 %v660, 0.0
    %v725 = vmax.f32 %v662, 0.0
    %v726 = vmax.f32 %v665, 0.0
    %v727 = vmax.f32 %v667, 0.0
    %v728 = vmax.f32 %v670, 0.0
    %v729 = vmax.f32 %v672, 0.0
    %v730 = vmax.f32 %v675, 0.0
    %v731 = vmax.f32 %v677, 0.0
    %v732 = vmax.f32 %v680, 0.0
    %v733 = vmax.f32 %v682, 0.0
    %v734 = vmax.f32 %v685, 0.0
    %v735 = vmax.f32 %v687, 0.0
    %v736 = vmax.f32 %v690, 0.0
    %v737 = vmax.f32 %v692, 0.0
    %v738 = vmax.f32 %v695, 0.0
    %v739 = vmax.f32 %v697, 0.0
    %v740 = vmax.f32 %v700, 0.0
    %v741 = vmax.f32 %v702, 0.0
    %v742 = vmax.f32 %v705, 0.0
    %v743 = vmax.f32 %v707, 0.0
    %v744 = vmax.f32 %v710, 0.0
    %v745 = vmax.f32 %v712, 0.0
    %v746 = vpack.c.bf16 %v715, %v714
    %v747 = vpack.c.bf16 %v717, %v716
    %v748 = vpack.c.bf16 %v719, %v718
    %v749 = vpack.c.bf16 %v721, %v720
    %v750 = vpack.c.bf16 %v723, %v722
    %v751 = vpack.c.bf16 %v725, %v724
    %v752 = vpack.c.bf16 %v727, %v726
    %v753 = vpack.c.bf16 %v729, %v728
    %v754 = vpack.c.bf16 %v731, %v730
    %v755 = vpack.c.bf16 %v733, %v732
    %v756 = vpack.c.bf16 %v735, %v734
    %v757 = vpack.c.bf16 %v737, %v736
    %v758 = vpack.c.bf16 %v739, %v738
    %v759 = vpack.c.bf16 %v741, %v740
    %v760 = vpack.c.bf16 %v743, %v742
    %v761 = vpack.c.bf16 %v745, %v744
    %v762 = vld [vmem:[#allocation10] sm:$0xff]
    %v763 = vld [vmem:[#allocation10 + $0x8] sm:$0xff]
    %v764 = vld [vmem:[#allocation10 + $0x10] sm:$0xff]
    %v765 = vld [vmem:[#allocation10 + $0x18] sm:$0xff]
    %v766 = vld [vmem:[#allocation10 + $0x20] sm:$0xff]
    %v767 = vld [vmem:[#allocation10 + $0x28] sm:$0xff]
    %v768 = vld [vmem:[#allocation10 + $0x30] sm:$0xff]
    %v769 = vld [vmem:[#allocation10 + $0x38] sm:$0xff]
    %v770 = vld [vmem:[#allocation10 + $0x40] sm:$0xff]
    %v771 = vld [vmem:[#allocation10 + $0x48] sm:$0xff]
    %v772 = vld [vmem:[#allocation10 + $0x50] sm:$0xff]
    %v773 = vld [vmem:[#allocation10 + $0x58] sm:$0xff]
    %v774 = vld [vmem:[#allocation10 + $0x60] sm:$0xff]
    %v775 = vld [vmem:[#allocation10 + $0x68] sm:$0xff]
    %v776 = vld [vmem:[#allocation10 + $0x70] sm:$0xff]
    %v777 = vld [vmem:[#allocation10 + $0x78] sm:$0xff]
    %v778 = vld [vmem:[%s6] sm:$0x3]
    %v780 = vperm.slane %v778, 0
    %v781 = vperm.slane %v778, 1
    %v800 = vunpack.c.l.b16 %v762
    %v801 = vunpack.c.h.b16 %v762
    %v802 = vunpack.c.l.b16 %v763
    %v803 = vunpack.c.h.b16 %v763
    %v804 = vunpack.c.l.b16 %v764
    %v805 = vunpack.c.h.b16 %v764
    %v806 = vunpack.c.l.b16 %v765
    %v807 = vunpack.c.h.b16 %v765
    %v808 = vunpack.c.l.b16 %v766
    %v809 = vunpack.c.h.b16 %v766
    %v810 = vunpack.c.l.b16 %v767
    %v811 = vunpack.c.h.b16 %v767
    %v812 = vunpack.c.l.b16 %v768
    %v813 = vunpack.c.h.b16 %v768
    %v814 = vunpack.c.l.b16 %v769
    %v815 = vunpack.c.h.b16 %v769
    %v816 = vunpack.c.l.b16 %v770
    %v817 = vunpack.c.h.b16 %v770
    %v818 = vunpack.c.l.b16 %v771
    %v819 = vunpack.c.h.b16 %v771
    %v820 = vunpack.c.l.b16 %v772
    %v821 = vunpack.c.h.b16 %v772
    %v822 = vunpack.c.l.b16 %v773
    %v823 = vunpack.c.h.b16 %v773
    %v824 = vunpack.c.l.b16 %v774
    %v825 = vunpack.c.h.b16 %v774
    %v826 = vunpack.c.l.b16 %v775
    %v827 = vunpack.c.h.b16 %v775
    %v828 = vunpack.c.l.b16 %v776
    %v829 = vunpack.c.h.b16 %v776
    %v830 = vunpack.c.l.b16 %v777
    %v831 = vunpack.c.h.b16 %v777
    %v832 = vpack.c.b16 %v802, %v800
    %v833 = vpack.c.b16 %v803, %v801
    %v834 = vpack.c.b16 %v806, %v804
    %v835 = vpack.c.b16 %v807, %v805
    %v836 = vpack.c.b16 %v810, %v808
    %v837 = vpack.c.b16 %v811, %v809
    %v838 = vpack.c.b16 %v814, %v812
    %v839 = vpack.c.b16 %v815, %v813
    %v840 = vpack.c.b16 %v818, %v816
    %v841 = vpack.c.b16 %v819, %v817
    %v842 = vpack.c.b16 %v822, %v820
    %v843 = vpack.c.b16 %v823, %v821
    %v844 = vpack.c.b16 %v826, %v824
    %v845 = vpack.c.b16 %v827, %v825
    %v846 = vpack.c.b16 %v830, %v828
    %v847 = vpack.c.b16 %v831, %v829
    %864 = vmatpush.bf16.msra.mxu0 %v846
    %865 = vmatpush.bf16.msra.mxu0 %v844
    %866 = vmatpush.bf16.msra.mxu0 %v842
    %867 = vmatpush.bf16.msra.mxu0 %v840
    %868 = vmatpush.bf16.msra.mxu0 %v838
    %869 = vmatpush.bf16.msra.mxu0 %v836
    %870 = vmatpush.bf16.msra.mxu0 %v834
    %871 = vmatpush.bf16.msra.mxu0 %v832
    %872 = vmatmul.bf16.gmra.mxu0 %v746
    %v873 = vpop.f32.mrf.mxu0
    %v874 = vadd.f32 %v780, %v873
    %v875 = vpop.f32.mrf.mxu0
    %v876 = vadd.f32 %v780, %v875
    %877 = vmatmul.bf16.gmra.mxu0 %v747
    %v878 = vpop.f32.mrf.mxu0
    %v879 = vadd.f32 %v780, %v878
    %v880 = vpop.f32.mrf.mxu0
    %v881 = vadd.f32 %v780, %v880
    %882 = vmatmul.bf16.gmra.mxu0 %v748
    %v883 = vpop.f32.mrf.mxu0
    %v884 = vadd.f32 %v780, %v883
    %v885 = vpop.f32.mrf.mxu0
    %v886 = vadd.f32 %v780, %v885
    %887 = vmatmul.bf16.gmra.mxu0 %v749
    %v888 = vpop.f32.mrf.mxu0
    %v889 = vadd.f32 %v780, %v888
    %v890 = vpop.f32.mrf.mxu0
    %v891 = vadd.f32 %v780, %v890
    %892 = vmatmul.bf16.gmra.mxu0 %v750
    %v893 = vpop.f32.mrf.mxu0
    %v894 = vadd.f32 %v780, %v893
    %v895 = vpop.f32.mrf.mxu0
    %v896 = vadd.f32 %v780, %v895
    %897 = vmatmul.bf16.gmra.mxu0 %v751
    %v898 = vpop.f32.mrf.mxu0
    %v899 = vadd.f32 %v780, %v898
    %v900 = vpop.f32.mrf.mxu0
    %v901 = vadd.f32 %v780, %v900
    %902 = vmatmul.bf16.gmra.mxu0 %v752
    %v903 = vpop.f32.mrf.mxu0
    %v904 = vadd.f32 %v780, %v903
    %v905 = vpop.f32.mrf.mxu0
    %v906 = vadd.f32 %v780, %v905
    %907 = vmatmul.bf16.gmra.mxu0 %v753
    %v908 = vpop.f32.mrf.mxu0
    %v909 = vadd.f32 %v780, %v908
    %v910 = vpop.f32.mrf.mxu0
    %v911 = vadd.f32 %v780, %v910
    %912 = vmatmul.bf16.gmra.mxu0 %v754
    %v913 = vpop.f32.mrf.mxu0
    %v914 = vadd.f32 %v780, %v913
    %v915 = vpop.f32.mrf.mxu0
    %v916 = vadd.f32 %v780, %v915
    %917 = vmatmul.bf16.gmra.mxu0 %v755
    %v918 = vpop.f32.mrf.mxu0
    %v919 = vadd.f32 %v780, %v918
    %v920 = vpop.f32.mrf.mxu0
    %v921 = vadd.f32 %v780, %v920
    %922 = vmatmul.bf16.gmra.mxu0 %v756
    %v923 = vpop.f32.mrf.mxu0
    %v924 = vadd.f32 %v780, %v923
    %v925 = vpop.f32.mrf.mxu0
    %v926 = vadd.f32 %v780, %v925
    %927 = vmatmul.bf16.gmra.mxu0 %v757
    %v928 = vpop.f32.mrf.mxu0
    %v929 = vadd.f32 %v780, %v928
    %v930 = vpop.f32.mrf.mxu0
    %v931 = vadd.f32 %v780, %v930
    %932 = vmatmul.bf16.gmra.mxu0 %v758
    %v933 = vpop.f32.mrf.mxu0
    %v934 = vadd.f32 %v780, %v933
    %v935 = vpop.f32.mrf.mxu0
    %v936 = vadd.f32 %v780, %v935
    %937 = vmatmul.bf16.gmra.mxu0 %v759
    %v938 = vpop.f32.mrf.mxu0
    %v939 = vadd.f32 %v780, %v938
    %v940 = vpop.f32.mrf.mxu0
    %v941 = vadd.f32 %v780, %v940
    %942 = vmatmul.bf16.gmra.mxu0 %v760
    %v943 = vpop.f32.mrf.mxu0
    %v944 = vadd.f32 %v780, %v943
    %v945 = vpop.f32.mrf.mxu0
    %v946 = vadd.f32 %v780, %v945
    %947 = vmatmul.bf16.gmra.mxu0 %v761
    %v948 = vpop.f32.mrf.mxu0
    %v949 = vadd.f32 %v780, %v948
    %v950 = vpop.f32.mrf.mxu0
    %v951 = vadd.f32 %v780, %v950
    %952 = vdwg.mxu0
    %953 = vmatpush.bf16.msra.mxu0 %v847
    %954 = vmatpush.bf16.msra.mxu0 %v845
    %955 = vmatpush.bf16.msra.mxu0 %v843
    %956 = vmatpush.bf16.msra.mxu0 %v841
    %957 = vmatpush.bf16.msra.mxu0 %v839
    %958 = vmatpush.bf16.msra.mxu0 %v837
    %959 = vmatpush.bf16.msra.mxu0 %v835
    %960 = vmatpush.bf16.msra.mxu0 %v833
    %961 = vmatmul.bf16.gmra.mxu0 %v746
    %v962 = vpop.f32.mrf.mxu0
    %v963 = vadd.f32 %v781, %v962
    %v964 = vpop.f32.mrf.mxu0
    %v965 = vadd.f32 %v781, %v964
    %966 = vmatmul.bf16.gmra.mxu0 %v747
    %v967 = vpop.f32.mrf.mxu0
    %v968 = vadd.f32 %v781, %v967
    %v969 = vpop.f32.mrf.mxu0
    %v970 = vadd.f32 %v781, %v969
    %971 = vmatmul.bf16.gmra.mxu0 %v748
    %v972 = vpop.f32.mrf.mxu0
    %v973 = vadd.f32 %v781, %v972
    %v974 = vpop.f32.mrf.mxu0
    %v975 = vadd.f32 %v781, %v974
    %976 = vmatmul.bf16.gmra.mxu0 %v749
    %v977 = vpop.f32.mrf.mxu0
    %v978 = vadd.f32 %v781, %v977
    %v979 = vpop.f32.mrf.mxu0
    %v980 = vadd.f32 %v781, %v979
    %981 = vmatmul.bf16.gmra.mxu0 %v750
    %v982 = vpop.f32.mrf.mxu0
    %v983 = vadd.f32 %v781, %v982
    %v984 = vpop.f32.mrf.mxu0
    %v985 = vadd.f32 %v781, %v984
    %986 = vmatmul.bf16.gmra.mxu0 %v751
    %v987 = vpop.f32.mrf.mxu0
    %v988 = vadd.f32 %v781, %v987
    %v989 = vpop.f32.mrf.mxu0
    %v990 = vadd.f32 %v781, %v989
    %991 = vmatmul.bf16.gmra.mxu0 %v752
    %v992 = vpop.f32.mrf.mxu0
    %v993 = vadd.f32 %v781, %v992
    %v994 = vpop.f32.mrf.mxu0
    %v995 = vadd.f32 %v781, %v994
    %996 = vmatmul.bf16.gmra.mxu0 %v753
    %v997 = vpop.f32.mrf.mxu0
    %v998 = vadd.f32 %v781, %v997
    %v999 = vpop.f32.mrf.mxu0
    %v1000 = vadd.f32 %v781, %v999
    %1001 = vmatmul.bf16.gmra.mxu0 %v754
    %v1002 = vpop.f32.mrf.mxu0
    %v1003 = vadd.f32 %v781, %v1002
    %v1004 = vpop.f32.mrf.mxu0
    %v1005 = vadd.f32 %v781, %v1004
    %1006 = vmatmul.bf16.gmra.mxu0 %v755
    %v1007 = vpop.f32.mrf.mxu0
    %v1008 = vadd.f32 %v781, %v1007
    %v1009 = vpop.f32.mrf.mxu0
    %v1010 = vadd.f32 %v781, %v1009
    %1011 = vmatmul.bf16.gmra.mxu0 %v756
    %v1012 = vpop.f32.mrf.mxu0
    %v1013 = vadd.f32 %v781, %v1012
    %v1014 = vpop.f32.mrf.mxu0
    %v1015 = vadd.f32 %v781, %v1014
    %1016 = vmatmul.bf16.gmra.mxu0 %v757
    %v1017 = vpop.f32.mrf.mxu0
    %v1018 = vadd.f32 %v781, %v1017
    %v1019 = vpop.f32.mrf.mxu0
    %v1020 = vadd.f32 %v781, %v1019
    %1021 = vmatmul.bf16.gmra.mxu0 %v758
    %v1022 = vpop.f32.mrf.mxu0
    %v1023 = vadd.f32 %v781, %v1022
    %v1024 = vpop.f32.mrf.mxu0
    %v1025 = vadd.f32 %v781, %v1024
    %1026 = vmatmul.bf16.gmra.mxu0 %v759
    %v1027 = vpop.f32.mrf.mxu0
    %v1028 = vadd.f32 %v781, %v1027
    %v1029 = vpop.f32.mrf.mxu0
    %v1030 = vadd.f32 %v781, %v1029
    %1031 = vmatmul.bf16.gmra.mxu0 %v760
    %v1032 = vpop.f32.mrf.mxu0
    %v1033 = vadd.f32 %v781, %v1032
    %v1034 = vpop.f32.mrf.mxu0
    %v1035 = vadd.f32 %v781, %v1034
    %1036 = vmatmul.bf16.gmra.mxu0 %v761
    %v1037 = vpop.f32.mrf.mxu0
    %v1038 = vadd.f32 %v781, %v1037
    %v1039 = vpop.f32.mrf.mxu0
    %v1040 = vadd.f32 %v781, %v1039
    %1041 = vdwg.mxu0
    %v1042 = vsub.f32 0.0, %v874
    %v1043 = vsub.f32 0.0, %v963
    %v1044 = vsub.f32 0.0, %v876
    %v1045 = vsub.f32 0.0, %v965
    %v1046 = vsub.f32 0.0, %v879
    %v1047 = vsub.f32 0.0, %v968
    %v1048 = vsub.f32 0.0, %v881
    %v1049 = vsub.f32 0.0, %v970
    %v1050 = vsub.f32 0.0, %v884
    %v1051 = vsub.f32 0.0, %v973
    %v1052 = vsub.f32 0.0, %v886
    %v1053 = vsub.f32 0.0, %v975
    %v1054 = vsub.f32 0.0, %v889
    %v1055 = vsub.f32 0.0, %v978
    %v1056 = vsub.f32 0.0, %v891
    %v1057 = vsub.f32 0.0, %v980
    %v1058 = vsub.f32 0.0, %v894
    %v1059 = vsub.f32 0.0, %v983
    %v1060 = vsub.f32 0.0, %v896
    %v1061 = vsub.f32 0.0, %v985
    %v1062 = vsub.f32 0.0, %v899
    %v1063 = vsub.f32 0.0, %v988
    %v1064 = vsub.f32 0.0, %v901
    %v1065 = vsub.f32 0.0, %v990
    %v1066 = vsub.f32 0.0, %v904
    %v1067 = vsub.f32 0.0, %v993
    %v1068 = vsub.f32 0.0, %v906
    %v1069 = vsub.f32 0.0, %v995
    %v1070 = vsub.f32 0.0, %v909
    %v1071 = vsub.f32 0.0, %v998
    %v1072 = vsub.f32 0.0, %v911
    %v1073 = vsub.f32 0.0, %v1000
    %v1074 = vsub.f32 0.0, %v914
    %v1075 = vsub.f32 0.0, %v1003
    %v1076 = vsub.f32 0.0, %v916
    %v1077 = vsub.f32 0.0, %v1005
    %v1078 = vsub.f32 0.0, %v919
    %v1079 = vsub.f32 0.0, %v1008
    %v1080 = vsub.f32 0.0, %v921
    %v1081 = vsub.f32 0.0, %v1010
    %v1082 = vsub.f32 0.0, %v924
    %v1083 = vsub.f32 0.0, %v1013
    %v1084 = vsub.f32 0.0, %v926
    %v1085 = vsub.f32 0.0, %v1015
    %v1086 = vsub.f32 0.0, %v929
    %v1087 = vsub.f32 0.0, %v1018
    %v1088 = vsub.f32 0.0, %v931
    %v1089 = vsub.f32 0.0, %v1020
    %v1090 = vsub.f32 0.0, %v934
    %v1091 = vsub.f32 0.0, %v1023
    %v1092 = vsub.f32 0.0, %v936
    %v1093 = vsub.f32 0.0, %v1025
    %v1094 = vsub.f32 0.0, %v939
    %v1095 = vsub.f32 0.0, %v1028
    %v1096 = vsub.f32 0.0, %v941
    %v1097 = vsub.f32 0.0, %v1030
    %v1098 = vsub.f32 0.0, %v944
    %v1099 = vsub.f32 0.0, %v1033
    %v1100 = vsub.f32 0.0, %v946
    %v1101 = vsub.f32 0.0, %v1035
    %v1102 = vsub.f32 0.0, %v949
    %v1103 = vsub.f32 0.0, %v1038
    %v1104 = vsub.f32 0.0, %v951
    %v1105 = vsub.f32 0.0, %v1040
    %v1106 = vmul.f32 %v1042, 1.442695
    %v1107 = vpow.pop %v1106
    %v1108 = vmul.f32 %v1043, 1.442695
    %v1109 = vpow.pop %v1108
    %v1110 = vmul.f32 %v1044, 1.442695
    %v1111 = vpow.pop %v1110
    %v1112 = vmul.f32 %v1045, 1.442695
    %v1113 = vpow.pop %v1112
    %v1114 = vmul.f32 %v1046, 1.442695
    %v1115 = vpow.pop %v1114
    %v1116 = vmul.f32 %v1047, 1.442695
    %v1117 = vpow.pop %v1116
    %v1118 = vmul.f32 %v1048, 1.442695
    %v1119 = vpow.pop %v1118
    %v1120 = vmul.f32 %v1049, 1.442695
    %v1121 = vpow.pop %v1120
    %v1122 = vmul.f32 %v1050, 1.442695
    %v1123 = vpow.pop %v1122
    %v1124 = vmul.f32 %v1051, 1.442695
    %v1125 = vpow.pop %v1124
    %v1126 = vmul.f32 %v1052, 1.442695
    %v1127 = vpow.pop %v1126
    %v1128 = vmul.f32 %v1053, 1.442695
    %v1129 = vpow.pop %v1128
    %v1130 = vmul.f32 %v1054, 1.442695
    %v1131 = vpow.pop %v1130
    %v1132 = vmul.f32 %v1055, 1.442695
    %v1133 = vpow.pop %v1132
    %v1134 = vmul.f32 %v1056, 1.442695
    %v1135 = vpow.pop %v1134
    %v1136 = vmul.f32 %v1057, 1.442695
    %v1137 = vpow.pop %v1136
    %v1138 = vmul.f32 %v1058, 1.442695
    %v1139 = vpow.pop %v1138
    %v1140 = vmul.f32 %v1059, 1.442695
    %v1141 = vpow.pop %v1140
    %v1142 = vmul.f32 %v1060, 1.442695
    %v1143 = vpow.pop %v1142
    %v1144 = vmul.f32 %v1061, 1.442695
    %v1145 = vpow.pop %v1144
    %v1146 = vmul.f32 %v1062, 1.442695
    %v1147 = vpow.pop %v1146
    %v1148 = vmul.f32 %v1063, 1.442695
    %v1149 = vpow.pop %v1148
    %v1150 = vmul.f32 %v1064, 1.442695
    %v1151 = vpow.pop %v1150
    %v1152 = vmul.f32 %v1065, 1.442695
    %v1153 = vpow.pop %v1152
    %v1154 = vmul.f32 %v1066, 1.442695
    %v1155 = vpow.pop %v1154
    %v1156 = vmul.f32 %v1067, 1.442695
    %v1157 = vpow.pop %v1156
    %v1158 = vmul.f32 %v1068, 1.442695
    %v1159 = vpow.pop %v1158
    %v1160 = vmul.f32 %v1069, 1.442695
    %v1161 = vpow.pop %v1160
    %v1162 = vmul.f32 %v1070, 1.442695
    %v1163 = vpow.pop %v1162
    %v1164 = vmul.f32 %v1071, 1.442695
    %v1165 = vpow.pop %v1164
    %v1166 = vmul.f32 %v1072, 1.442695
    %v1167 = vpow.pop %v1166
    %v1168 = vmul.f32 %v1073, 1.442695
    %v1169 = vpow.pop %v1168
    %v1170 = vmul.f32 %v1074, 1.442695
    %v1171 = vpow.pop %v1170
    %v1172 = vmul.f32 %v1075, 1.442695
    %v1173 = vpow.pop %v1172
    %v1174 = vmul.f32 %v1076, 1.442695
    %v1175 = vpow.pop %v1174
    %v1176 = vmul.f32 %v1077, 1.442695
    %v1177 = vpow.pop %v1176
    %v1178 = vmul.f32 %v1078, 1.442695
    %v1179 = vpow.pop %v1178
    %v1180 = vmul.f32 %v1079, 1.442695
    %v1181 = vpow.pop %v1180
    %v1182 = vmul.f32 %v1080, 1.442695
    %v1183 = vpow.pop %v1182
    %v1184 = vmul.f32 %v1081, 1.442695
    %v1185 = vpow.pop %v1184
    %v1186 = vmul.f32 %v1082, 1.442695
    %v1187 = vpow.pop %v1186
    %v1188 = vmul.f32 %v1083, 1.442695
    %v1189 = vpow.pop %v1188
    %v1190 = vmul.f32 %v1084, 1.442695
    %v1191 = vpow.pop %v1190
    %v1192 = vmul.f32 %v1085, 1.442695
    %v1193 = vpow.pop %v1192
    %v1194 = vmul.f32 %v1086, 1.442695
    %v1195 = vpow.pop %v1194
    %v1196 = vmul.f32 %v1087, 1.442695
    %v1197 = vpow.pop %v1196
    %v1198 = vmul.f32 %v1088, 1.442695
    %v1199 = vpow.pop %v1198
    %v1200 = vmul.f32 %v1089, 1.442695
    %v1201 = vpow.pop %v1200
    %v1202 = vmul.f32 %v1090, 1.442695
    %v1203 = vpow.pop %v1202
    %v1204 = vmul.f32 %v1091, 1.442695
    %v1205 = vpow.pop %v1204
    %v1206 = vmul.f32 %v1092, 1.442695
    %v1207 = vpow.pop %v1206
    %v1208 = vmul.f32 %v1093, 1.442695
    %v1209 = vpow.pop %v1208
    %v1210 = vmul.f32 %v1094, 1.442695
    %v1211 = vpow.pop %v1210
    %v1212 = vmul.f32 %v1095, 1.442695
    %v1213 = vpow.pop %v1212
    %v1214 = vmul.f32 %v1096, 1.442695
    %v1215 = vpow.pop %v1214
    %v1216 = vmul.f32 %v1097, 1.442695
    %v1217 = vpow.pop %v1216
    %v1218 = vmul.f32 %v1098, 1.442695
    %v1219 = vpow.pop %v1218
    %v1220 = vmul.f32 %v1099, 1.442695
    %v1221 = vpow.pop %v1220
    %v1222 = vmul.f32 %v1100, 1.442695
    %v1223 = vpow.pop %v1222
    %v1224 = vmul.f32 %v1101, 1.442695
    %v1225 = vpow.pop %v1224
    %v1226 = vmul.f32 %v1102, 1.442695
    %v1227 = vpow.pop %v1226
    %v1228 = vmul.f32 %v1103, 1.442695
    %v1229 = vpow.pop %v1228
    %v1230 = vmul.f32 %v1104, 1.442695
    %v1231 = vpow.pop %v1230
    %v1232 = vmul.f32 %v1105, 1.442695
    %v1233 = vpow.pop %v1232
    %v1234 = vadd.f32 %v1107, 1.0
    %v1235 = vadd.f32 %v1109, 1.0
    %v1236 = vadd.f32 %v1111, 1.0
    %v1237 = vadd.f32 %v1113, 1.0
    %v1238 = vadd.f32 %v1115, 1.0
    %v1239 = vadd.f32 %v1117, 1.0
    %v1240 = vadd.f32 %v1119, 1.0
    %v1241 = vadd.f32 %v1121, 1.0
    %v1242 = vadd.f32 %v1123, 1.0
    %v1243 = vadd.f32 %v1125, 1.0
    %v1244 = vadd.f32 %v1127, 1.0
    %v1245 = vadd.f32 %v1129, 1.0
    %v1246 = vadd.f32 %v1131, 1.0
    %v1247 = vadd.f32 %v1133, 1.0
    %v1248 = vadd.f32 %v1135, 1.0
    %v1249 = vadd.f32 %v1137, 1.0
    %v1250 = vadd.f32 %v1139, 1.0
    %v1251 = vadd.f32 %v1141, 1.0
    %v1252 = vadd.f32 %v1143, 1.0
    %v1253 = vadd.f32 %v1145, 1.0
    %v1254 = vadd.f32 %v1147, 1.0
    %v1255 = vadd.f32 %v1149, 1.0
    %v1256 = vadd.f32 %v1151, 1.0
    %v1257 = vadd.f32 %v1153, 1.0
    %v1258 = vadd.f32 %v1155, 1.0
    %v1259 = vadd.f32 %v1157, 1.0
    %v1260 = vadd.f32 %v1159, 1.0
    %v1261 = vadd.f32 %v1161, 1.0
    %v1262 = vadd.f32 %v1163, 1.0
    %v1263 = vadd.f32 %v1165, 1.0
    %v1264 = vadd.f32 %v1167, 1.0
    %v1265 = vadd.f32 %v1169, 1.0
    %v1266 = vadd.f32 %v1171, 1.0
    %v1267 = vadd.f32 %v1173, 1.0
    %v1268 = vadd.f32 %v1175, 1.0
    %v1269 = vadd.f32 %v1177, 1.0
    %v1270 = vadd.f32 %v1179, 1.0
    %v1271 = vadd.f32 %v1181, 1.0
    %v1272 = vadd.f32 %v1183, 1.0
    %v1273 = vadd.f32 %v1185, 1.0
    %v1274 = vadd.f32 %v1187, 1.0
    %v1275 = vadd.f32 %v1189, 1.0
    %v1276 = vadd.f32 %v1191, 1.0
    %v1277 = vadd.f32 %v1193, 1.0
    %v1278 = vadd.f32 %v1195, 1.0
    %v1279 = vadd.f32 %v1197, 1.0
    %v1280 = vadd.f32 %v1199, 1.0
    %v1281 = vadd.f32 %v1201, 1.0
    %v1282 = vadd.f32 %v1203, 1.0
    %v1283 = vadd.f32 %v1205, 1.0
    %v1284 = vadd.f32 %v1207, 1.0
    %v1285 = vadd.f32 %v1209, 1.0
    %v1286 = vadd.f32 %v1211, 1.0
    %v1287 = vadd.f32 %v1213, 1.0
    %v1288 = vadd.f32 %v1215, 1.0
    %v1289 = vadd.f32 %v1217, 1.0
    %v1290 = vadd.f32 %v1219, 1.0
    %v1291 = vadd.f32 %v1221, 1.0
    %v1292 = vadd.f32 %v1223, 1.0
    %v1293 = vadd.f32 %v1225, 1.0
    %v1294 = vadd.f32 %v1227, 1.0
    %v1295 = vadd.f32 %v1229, 1.0
    %v1296 = vadd.f32 %v1231, 1.0
    %v1297 = vadd.f32 %v1233, 1.0
    %v1298 = vrcp.pop %v1234
    %v1299 = vrcp.pop %v1235
    %v1300 = vrcp.pop %v1236
    %v1301 = vrcp.pop %v1237
    %v1302 = vrcp.pop %v1238
    %v1303 = vrcp.pop %v1239
    %v1304 = vrcp.pop %v1240
    %v1305 = vrcp.pop %v1241
    %v1306 = vrcp.pop %v1242
    %v1307 = vrcp.pop %v1243
    %v1308 = vrcp.pop %v1244
    %v1309 = vrcp.pop %v1245
    %v1310 = vrcp.pop %v1246
    %v1311 = vrcp.pop %v1247
    %v1312 = vrcp.pop %v1248
    %v1313 = vrcp.pop %v1249
    %v1314 = vrcp.pop %v1250
    %v1315 = vrcp.pop %v1251
    %v1316 = vrcp.pop %v1252
    %v1317 = vrcp.pop %v1253
    %v1318 = vrcp.pop %v1254
    %v1319 = vrcp.pop %v1255
    %v1320 = vrcp.pop %v1256
    %v1321 = vrcp.pop %v1257
    %v1322 = vrcp.pop %v1258
    %v1323 = vrcp.pop %v1259
    %v1324 = vrcp.pop %v1260
    %v1325 = vrcp.pop %v1261
    %v1326 = vrcp.pop %v1262
    %v1327 = vrcp.pop %v1263
    %v1328 = vrcp.pop %v1264
    %v1329 = vrcp.pop %v1265
    %v1330 = vrcp.pop %v1266
    %v1331 = vrcp.pop %v1267
    %v1332 = vrcp.pop %v1268
    %v1333 = vrcp.pop %v1269
    %v1334 = vrcp.pop %v1270
    %v1335 = vrcp.pop %v1271
    %v1336 = vrcp.pop %v1272
    %v1337 = vrcp.pop %v1273
    %v1338 = vrcp.pop %v1274
    %v1339 = vrcp.pop %v1275
    %v1340 = vrcp.pop %v1276
    %v1341 = vrcp.pop %v1277
    %v1342 = vrcp.pop %v1278
    %v1343 = vrcp.pop %v1279
    %v1344 = vrcp.pop %v1280
    %v1345 = vrcp.pop %v1281
    %v1346 = vrcp.pop %v1282
    %v1347 = vrcp.pop %v1283
    %v1348 = vrcp.pop %v1284
    %v1349 = vrcp.pop %v1285
    %v1350 = vrcp.pop %v1286
    %v1351 = vrcp.pop %v1287
    %v1352 = vrcp.pop %v1288
    %v1353 = vrcp.pop %v1289
    %v1354 = vrcp.pop %v1290
    %v1355 = vrcp.pop %v1291
    %v1356 = vrcp.pop %v1292
    %v1357 = vrcp.pop %v1293
    %v1358 = vrcp.pop %v1294
    %v1359 = vrcp.pop %v1295
    %v1360 = vrcp.pop %v1296
    %v1361 = vrcp.pop %v1297
    %1362 = vst [vmem:[#allocation11] sm:$0xff] %v1298
    %1363 = vst [vmem:[#allocation11 + $0x8] sm:$0xff] %v1299
    %1364 = vst [vmem:[#allocation11 + $0x10] sm:$0xff] %v1300
    %1365 = vst [vmem:[#allocation11 + $0x18] sm:$0xff] %v1301
    %1366 = vst [vmem:[#allocation11 + $0x20] sm:$0xff] %v1302
    %1367 = vst [vmem:[#allocation11 + $0x28] sm:$0xff] %v1303
    %1368 = vst [vmem:[#allocation11 + $0x30] sm:$0xff] %v1304
    %1369 = vst [vmem:[#allocation11 + $0x38] sm:$0xff] %v1305
    %1370 = vst [vmem:[#allocation11 + $0x40] sm:$0xff] %v1306
    %1371 = vst [vmem:[#allocation11 + $0x48] sm:$0xff] %v1307
    %1372 = vst [vmem:[#allocation11 + $0x50] sm:$0xff] %v1308
    %1373 = vst [vmem:[#allocation11 + $0x58] sm:$0xff] %v1309
    %1374 = vst [vmem:[#allocation11 + $0x60] sm:$0xff] %v1310
    %1375 = vst [vmem:[#allocation11 + $0x68] sm:$0xff] %v1311
    %1376 = vst [vmem:[#allocation11 + $0x70] sm:$0xff] %v1312
    %1377 = vst [vmem:[#allocation11 + $0x78] sm:$0xff] %v1313
    %1378 = vst [vmem:[#allocation11 + $0x80] sm:$0xff] %v1314
    %1379 = vst [vmem:[#allocation11 + $0x88] sm:$0xff] %v1315
    %1380 = vst [vmem:[#allocation11 + $0x90] sm:$0xff] %v1316
    %1381 = vst [vmem:[#allocation11 + $0x98] sm:$0xff] %v1317
    %1382 = vst [vmem:[#allocation11 + $0xa0] sm:$0xff] %v1318
    %1383 = vst [vmem:[#allocation11 + $0xa8] sm:$0xff] %v1319
    %1384 = vst [vmem:[#allocation11 + $0xb0] sm:$0xff] %v1320
    %1385 = vst [vmem:[#allocation11 + $0xb8] sm:$0xff] %v1321
    %1386 = vst [vmem:[#allocation11 + $0xc0] sm:$0xff] %v1322
    %1387 = vst [vmem:[#allocation11 + $0xc8] sm:$0xff] %v1323
    %1388 = vst [vmem:[#allocation11 + $0xd0] sm:$0xff] %v1324
    %1389 = vst [vmem:[#allocation11 + $0xd8] sm:$0xff] %v1325
    %1390 = vst [vmem:[#allocation11 + $0xe0] sm:$0xff] %v1326
    %1391 = vst [vmem:[#allocation11 + $0xe8] sm:$0xff] %v1327
    %1392 = vst [vmem:[#allocation11 + $0xf0] sm:$0xff] %v1328
    %1393 = vst [vmem:[#allocation11 + $0xf8] sm:$0xff] %v1329
    %1394 = vst [vmem:[#allocation11 + $0x100] sm:$0xff] %v1330
    %1395 = vst [vmem:[#allocation11 + $0x108] sm:$0xff] %v1331
    %1396 = vst [vmem:[#allocation11 + $0x110] sm:$0xff] %v1332
    %1397 = vst [vmem:[#allocation11 + $0x118] sm:$0xff] %v1333
    %1398 = vst [vmem:[#allocation11 + $0x120] sm:$0xff] %v1334
    %1399 = vst [vmem:[#allocation11 + $0x128] sm:$0xff] %v1335
    %1400 = vst [vmem:[#allocation11 + $0x130] sm:$0xff] %v1336
    %1401 = vst [vmem:[#allocation11 + $0x138] sm:$0xff] %v1337
    %1402 = vst [vmem:[#allocation11 + $0x140] sm:$0xff] %v1338
    %1403 = vst [vmem:[#allocation11 + $0x148] sm:$0xff] %v1339
    %1404 = vst [vmem:[#allocation11 + $0x150] sm:$0xff] %v1340
    %1405 = vst [vmem:[#allocation11 + $0x158] sm:$0xff] %v1341
    %1406 = vst [vmem:[#allocation11 + $0x160] sm:$0xff] %v1342
    %1407 = vst [vmem:[#allocation11 + $0x168] sm:$0xff] %v1343
    %1408 = vst [vmem:[#allocation11 + $0x170] sm:$0xff] %v1344
    %1409 = vst [vmem:[#allocation11 + $0x178] sm:$0xff] %v1345
    %1410 = vst [vmem:[#allocation11 + $0x180] sm:$0xff] %v1346
    %1411 = vst [vmem:[#allocation11 + $0x188] sm:$0xff] %v1347
    %1412 = vst [vmem:[#allocation11 + $0x190] sm:$0xff] %v1348
    %1413 = vst [vmem:[#allocation11 + $0x198] sm:$0xff] %v1349
    %1414 = vst [vmem:[#allocation11 + $0x1a0] sm:$0xff] %v1350
    %1415 = vst [vmem:[#allocation11 + $0x1a8] sm:$0xff] %v1351
    %1416 = vst [vmem:[#allocation11 + $0x1b0] sm:$0xff] %v1352
    %1417 = vst [vmem:[#allocation11 + $0x1b8] sm:$0xff] %v1353
    %1418 = vst [vmem:[#allocation11 + $0x1c0] sm:$0xff] %v1354
    %1419 = vst [vmem:[#allocation11 + $0x1c8] sm:$0xff] %v1355
    %1420 = vst [vmem:[#allocation11 + $0x1d0] sm:$0xff] %v1356
    %1421 = vst [vmem:[#allocation11 + $0x1d8] sm:$0xff] %v1357
    %1422 = vst [vmem:[#allocation11 + $0x1e0] sm:$0xff] %v1358
    %1423 = vst [vmem:[#allocation11 + $0x1e8] sm:$0xff] %v1359
    %1424 = vst [vmem:[#allocation11 + $0x1f0] sm:$0xff] %v1360
    %1425 = vst [vmem:[#allocation11 + $0x1f8] sm:$0xff] %v1361
    // Predicated region
    $region50: #{tpu_custom_call.1} parent=1 // pred_check
      _
    $region51: #{tpu_custom_call.1} parent=1 // pred_check_branch
      %1427 = sbr.rel (0) target = $region53
    $region52: #{tpu_custom_call.1} parent=1 // pred_region
      %1429 = vsyncadd [#allocation4], 0
      %s1430 = sshll.u32 [#allocation11], 4
      %s1431 = int_to_ptr.vmem [resolvable:$true] %s1430
      %s1432 = sshll.u32 %s7, 4
      %s1433 = int_to_ptr.hbm [resolvable:$true] %s1432
      %1438 = dma.vmem_to_hbm [thread:$0]  %s1431, 8192, %s1433, [#allocation4], 256, 256, 16
    $region53: #{tpu_custom_call.1} parent=1 // pred_fallthru
      _
    // Predicated region
    $region54: #{tpu_custom_call.1} parent=1 // pred_check
      _
    $region55: #{tpu_custom_call.1} parent=1 // pred_check_branch
      %1440 = sbr.rel (0) target = $region57
    $region56: #{tpu_custom_call.1} parent=1 // pred_region
      %1442 = dma.done [#allocation4], 8192
    $region57: #{tpu_custom_call.1} parent=1 // pred_fallthru
      _
    %1443 = vsyncpa [#allocation3], 1
    %1444 = vsyncpa [#allocation6], 1
    %1445 = vsyncpa [#allocation9], 1
    %1446 = vsyncpa [#allocation4], 1

</llo_original>
